<compile_context>
chip_gen: v6e
topology: v6e:2x2x1
jax: 0.10.0
libtpu: 0.0.40
codegen_flags: <defaults>
</compile_context>

<pallas_src>
import jax
import jax.numpy as jnp
from jax.experimental import pallas as pl
from jax.experimental.pallas import tpu as pltpu


def _round_up(x, m):
    return (x + m - 1) // m * m


# ----------------------------- Pallas kernel --------------------------------
def _cistrome_emb_kernel(mask_t_ref, x_ref, o_ref, acc_ref):
    # mask_t_ref: (tn, tk)   transposed normalized mask tile: [regulator, cistrome]
    # x_ref:      (tk, td)   activation tile:                 [cistrome, hidden]
    # o_ref:      (tn, td)   output tile:                     [regulator, hidden]
    # acc_ref:    (tn, td)   f32 accumulator (VMEM scratch, resident across k)
    k = pl.program_id(3)

    @pl.when(k == 0)
    def _():
        acc_ref[...] = jnp.zeros_like(acc_ref)

    acc_ref[...] += jnp.dot(
        mask_t_ref[...], x_ref[...], preferred_element_type=jnp.float32
    )

    @pl.when(k == pl.num_programs(3) - 1)
    def _():
        o_ref[...] = acc_ref[...].astype(o_ref.dtype)


def cistrome_embedding(x, mask_t, *, tn=256, tk=512, td=512,
                       vmem_limit_bytes=48 * 1024 * 1024):
    """emb[b, r, d] = sum_c x[b, c, d] * mask_t[r, c].

    x:      (B, N_cistrome, D)
    mask_t: (N_regulator, N_cistrome)   -- pre-transposed normalized mask
    """
    B, N_c, D = x.shape
    N_r, N_c2 = mask_t.shape
    assert N_c == N_c2, (N_c, N_c2)

    # Mirror `self.normalized_mtx_mask.to(x.dtype)` from the PyTorch module.
    mask_t = mask_t.astype(x.dtype)

    # Clamp tile sizes to the (alignment-rounded) problem dims, keeping TPU layout
    # constraints: lane dims (tk on the mask, td on x/out) multiples of 128,
    # sublane dims (tn, tk on x) multiples of 8.
    tk = min(tk, _round_up(N_c, 128))
    tn = min(tn, _round_up(N_r, 8))
    td = min(td, _round_up(D, 128))

    N_c_p = _round_up(N_c, tk)
    N_r_p = _round_up(N_r, tn)
    D_p = _round_up(D, td)

    # Zero padding: padded cistromes contribute nothing (mask and x pad are 0);
    # padded regulator rows / hidden cols are sliced off after the call.
    if (N_c_p, D_p) != (N_c, D):
        x = jnp.pad(x, ((0, 0), (0, N_c_p - N_c), (0, D_p - D)))
    if (N_r_p, N_c_p) != (N_r, N_c):
        mask_t = jnp.pad(mask_t, ((0, N_r_p - N_r), (0, N_c_p - N_c)))

    grid = (B, N_r_p // tn, D_p // td, N_c_p // tk)

    out_p = pl.pallas_call(
        _cistrome_emb_kernel,
        out_shape=jax.ShapeDtypeStruct((B, N_r_p, D_p), x.dtype),
        grid=grid,
        in_specs=[
            # mask^T tile: varies with (regulator tile, k tile)
            pl.BlockSpec((tn, tk), lambda b, r, d, k: (r, k)),
            # x tile: batch dim squeezed -> kernel sees a clean 2-D (tk, td) ref
            pl.BlockSpec((pl.Squeezed(), tk, td), lambda b, r, d, k: (b, k, d)),
        ],
        out_specs=pl.BlockSpec((pl.Squeezed(), tn, td), lambda b, r, d, k: (b, r, d)),
        scratch_shapes=[pltpu.VMEM((tn, td), jnp.float32)],
        compiler_params=pltpu.CompilerParams(
            dimension_semantics=("parallel", "parallel", "parallel", "arbitrary"),
            vmem_limit_bytes=vmem_limit_bytes,
        ),
    )(mask_t, x)

    return out_p[:, :N_r, :D]


# --------------------------- module-equivalent glue --------------------------
def make_normalized_mtx_mask(key, n_cistrome, n_regulator, dtype=jnp.float32):
    """Synthetic binary cistrome->regulator mask + per-regulator normalization,
    mirroring CistromeEmbeddingManager.__init__ (mask / factor_num.clamp(min=1))."""
    mask = (jax.random.uniform(key, (n_cistrome, n_regulator)) < 0.3).astype(dtype)
    factor_num = jnp.sum((mask != 0).astype(jnp.int32), axis=0)
    normalization_factors = jnp.maximum(factor_num, 1)            # clamp(min=1)
    normalized = mask / normalization_factors.astype(dtype)       # (N_c, N_r)
    return normalized


def prepare_mask_t(normalized_mtx_mask, dtype=None):
    """One-time HBM-side transpose (and optional dtype cast, e.g. bf16 for the MXU)."""
    mask_t = normalized_mtx_mask.T                                # (N_r, N_c)
    if dtype is not None:
        mask_t = mask_t.astype(dtype)
    return mask_t


def pretrain_model_stub(params, input_ids, position_ids):
    """Deterministic stand-in for the pretrained ChromBERT encoder:
    returns hidden states of shape (B, N_cistrome, D)."""
    tok = params["tok_emb"][input_ids]       # (B, N_c, D)
    pos = params["pos_emb"][position_ids]    # (B, N_c, D)
    return tok + pos


def chrombert_embedding_forward(params, mask_t, batch):
    # torch.no_grad() + pretrain_model.eval(): inference-only path (default here).
    x = pretrain_model_stub(params, batch["input_ids"], batch["position_ids"])
    hidden_cistrome = x                              # (B, N_cistrome, D)
    emb = cistrome_embedding(x, mask_t)              # (B, N_regulator, D)
    return emb, hidden_cistrome


# --------------------------------- main --------------------------------------
if __name__ == "__main__":
    B, N_CISTROME, N_REGULATOR, D = 2, 16, 8, 32
    VOCAB, MAX_POS = 10, N_CISTROME

    key = jax.random.PRNGKey(0)
    k_mask, k_tok, k_pos, k_ids = jax.random.split(key, 4)

    normalized_mtx_mask = make_normalized_mtx_mask(k_mask, N_CISTROME, N_REGULATOR)
    mask_t = prepare_mask_t(normalized_mtx_mask)     # static: transpose once in HBM

    params = {
        "tok_emb": jax.random.normal(k_tok, (VOCAB, D), dtype=jnp.float32) * 0.02,
        "pos_emb": jax.random.normal(k_pos, (MAX_POS, D), dtype=jnp.float32) * 0.02,
    }

    batch = {
        "input_ids": jax.random.randint(k_ids, (B, N_CISTROME), 0, VOCAB),
        "position_ids": jnp.broadcast_to(jnp.arange(N_CISTROME), (B, N_CISTROME)),
    }

    emb, hidden = chrombert_embedding_forward(params, mask_t, batch)
    emb = jax.block_until_ready(emb)

    # Pure-JAX reference of the Pallas hot path (x^T @ mask, transposed back).
    ref = jnp.einsum("bcd,cr->brd", hidden, normalized_mtx_mask)
    assert emb.shape == (B, N_REGULATOR, D), emb.shape
    assert jnp.allclose(emb, ref, atol=1e-5, rtol=1e-5), float(jnp.abs(emb - ref).max())

    print("KERNEL_OK")
</pallas_src>

<mosaic_0001>
module attributes {stable_mosaic.version = 11 : i64} {
  func.func @_cistrome_emb_kernel(%arg0: i32, %arg1: i32, %arg2: i32, %arg3: i32, %arg4: memref<8x128xf32, #tpu.memory_space<vmem>>, %arg5: memref<1x128x128xf32, #tpu.memory_space<vmem>>, %arg6: memref<1x8x128xf32, #tpu.memory_space<vmem>>, %arg7: memref<8x128xf32, #tpu.memory_space<vmem>>) attributes {dimension_semantics = [#tpu.dimension_semantics<parallel>, #tpu.dimension_semantics<parallel>, #tpu.dimension_semantics<parallel>, #tpu.dimension_semantics<arbitrary>], iteration_bounds = array<i64: 2, 1, 1, 1>, scalar_prefetch = 0 : i64, scratch_operands = 1 : i64, tpu.core_type = #tpu.core_type<tc>, window_params = [{transform_indices = @transform_0, window_bounds = array<i64: 8, 128>}, {transform_indices = @transform_1, window_bounds = array<i64: 1, 128, 128>}, {transform_indices = @transform_2, window_bounds = array<i64: 1, 8, 128>}]} {
    %c0_i32 = arith.constant 0 : i32
    %0 = arith.cmpi eq, %arg3, %c0_i32 : i32
    %1 = arith.extui %0 : i1 to i32
    %c0_i32_0 = arith.constant 0 : i32
    %2 = arith.cmpi ne, %1, %c0_i32_0 : i32
    scf.if %2 {
      %cst_11 = arith.constant 0.000000e+00 : f32
      %13 = vector.broadcast %cst_11 : f32 to vector<8x128xf32>
      %c0_12 = arith.constant 0 : index
      %c0_13 = arith.constant 0 : index
      %14 = vector.load %arg7[%c0_12, %c0_13] : memref<8x128xf32, #tpu.memory_space<vmem>>, vector<8x128xf32>
      tpu.vector_store %arg7[%c0_12, %c0_13], %13 {strides = array<i32>} : memref<8x128xf32, #tpu.memory_space<vmem>>, vector<8x128xf32>,
    } else {
    }
    %c0 = arith.constant 0 : index
    %c0_1 = arith.constant 0 : index
    %3 = vector.load %arg7[%c0, %c0_1] : memref<8x128xf32, #tpu.memory_space<vmem>>, vector<8x128xf32>
    %c0_2 = arith.constant 0 : index
    %c0_3 = arith.constant 0 : index
    %4 = vector.load %arg4[%c0_2, %c0_3] : memref<8x128xf32, #tpu.memory_space<vmem>>, vector<8x128xf32>
    %c0_4 = arith.constant 0 : index
    %c0_5 = arith.constant 0 : index
    %c0_6 = arith.constant 0 : index
    %5 = vector.load %arg5[%c0_4, %c0_5, %c0_6] : memref<1x128x128xf32, #tpu.memory_space<vmem>>, vector<1x128x128xf32>
    %6 = vector.shape_cast %5 : vector<1x128x128xf32> to vector<128x128xf32>
    %cst = arith.constant dense<0.000000e+00> : vector<8x128xf32>
    %7 = tpu.matmul %4, %6, %cst {dimension_numbers = #tpu.dot_dimension_numbers<[1], [0], [0], [1], [0, 0, 1, 1], [], []>} : vector<8x128xf32>, vector<128x128xf32>, vector<8x128xf32> -> vector<8x128xf32>
    %8 = arith.addf %3, %7 : vector<8x128xf32>
    %c0_7 = arith.constant 0 : index
    %c0_8 = arith.constant 0 : index
    %9 = vector.load %arg7[%c0_7, %c0_8] : memref<8x128xf32, #tpu.memory_space<vmem>>, vector<8x128xf32>
    tpu.vector_store %arg7[%c0_7, %c0_8], %8 {strides = array<i32>} : memref<8x128xf32, #tpu.memory_space<vmem>>, vector<8x128xf32>,
    %c0_i32_9 = arith.constant 0 : i32
    %10 = arith.cmpi eq, %arg3, %c0_i32_9 : i32
    %11 = arith.extui %10 : i1 to i32
    %c0_i32_10 = arith.constant 0 : i32
    %12 = arith.cmpi ne, %11, %c0_i32_10 : i32
    scf.if %12 {
      %c0_11 = arith.constant 0 : index
      %c0_12 = arith.constant 0 : index
      %13 = vector.load %arg7[%c0_11, %c0_12] : memref<8x128xf32, #tpu.memory_space<vmem>>, vector<8x128xf32>
      %c0_13 = arith.constant 0 : index
      %c0_14 = arith.constant 0 : index
      %c0_15 = arith.constant 0 : index
      %14 = vector.load %arg6[%c0_13, %c0_14, %c0_15] : memref<1x8x128xf32, #tpu.memory_space<vmem>>, vector<1x8x128xf32>
      %15 = vector.shape_cast %14 : vector<1x8x128xf32> to vector<8x128xf32>
      %16 = vector.shape_cast %13 : vector<8x128xf32> to vector<1x8x128xf32>
      tpu.vector_store %arg6[%c0_13, %c0_14, %c0_15], %16 {strides = array<i32>} : memref<1x8x128xf32, #tpu.memory_space<vmem>>, vector<1x8x128xf32>,
    } else {
    }
    return
  }
  func.func @transform_0(%arg0: i32, %arg1: i32, %arg2: i32, %arg3: i32) -> (i32, i32) {
    %c0_i32 = arith.constant 0 : i32
    return %arg1, %arg3 : i32, i32
  }
  func.func @transform_1(%arg0: i32, %arg1: i32, %arg2: i32, %arg3: i32) -> (i32, i32, i32) {
    %c0_i32 = arith.constant 0 : i32
    return %arg0, %arg3, %arg2 : i32, i32, i32
  }
  func.func @transform_2(%arg0: i32, %arg1: i32, %arg2: i32, %arg3: i32) -> (i32, i32, i32) {
    %c0_i32 = arith.constant 0 : i32
    return %arg0, %arg1, %arg2 : i32, i32, i32
  }
}

</mosaic_0001>

<llo_original>
// kernel: tpu_custom_call.1
$region0: #{tpu_custom_call.1}
  #allocation0 [shape = 'u32[]', space=smem, size = 0x4, offset = 0x4, fixed_abs, tag = 'smem constant byte address 0x4 - core index']
  #allocation1 [shape = 'u32[144,128]{1,0:T(1,128)}', space=vmem, size = 0x12000, scoped, tag = 'internal scratch']
  #allocation2 [shape = 'f32[8,128]{1,0:T(8,128)}', space=vmem, size = 0x1000, scoped, tag = 'scratch operand']
  %s0 = inlined_call_operand.hbm [shape: f32[8,128], index: 0, kind: input, shape index: {}]
  %s1 = inlined_call_operand.hbm [shape: f32[2,128,128], index: 1, kind: input, shape index: {}]
  %s2 = inlined_call_operand.hbm [shape: f32[2,8,128], index: 2, kind: output, shape index: {}]
  %s3 = sld [smem:[#allocation0]]
  $region57: #{tpu_custom_call.1} parent=0
    _
  %s5 = ssub.s32 1, %s3
  %s6 = scalar_select 0, %s5, %s3
  $region1: #{tpu_custom_call.1} parent=0
    #allocation3 [shape = 'u8[4096]{0}', space=vmem, size = 0x1000, scoped, tag = 'input window, operand 0, single buffered']
    #allocation4 [shape = 's32[2]{0}', space=sflag, size = 0x8, scoped, tag = 'scoped memory for tpu_custom_call.1']
    #allocation5 [shape = 's32[2]{0}', space=sflag, size = 0x8, scoped, tag = 'scoped memory for tpu_custom_call.1']
    #allocation6 [shape = 'u8[131072]{0}', space=vmem, size = 0x20000, scoped, tag = 'input window, operand 1']
    #allocation7 [shape = 's32[2]{0}', space=sflag, size = 0x8, scoped, tag = 'scoped memory for tpu_custom_call.1']
    #allocation8 [shape = 'u8[8192]{0}', space=vmem, size = 0x2000, scoped, tag = 'output window, operand 0']
    %7 = vsyncpa [#allocation4], 0
    %8 = vsyncpa [#allocation7], 0
    %s9 = scalar_lea.sflag [#allocation7], 1
    %10 = vsyncpa %s9, 0
    %11 = vsyncpa [#allocation5], 0
    %s12 = scalar_lea.sflag [#allocation5], 1
    %13 = vsyncpa %s12, 0
    loop: start=0, step=1, limit=4
    $region2: #{tpu_custom_call.1} parent=1 // loop_pre_header
      _
    $region3: #{tpu_custom_call.1} parent=1 // loop_header
      %s15 = sphi 0, %s19
      %p16 = scmp.ge.s32.totalorder %s15, 4
      %s22 = sphi 0, %s48
      %s23 = sphi 0, %s44
      %s24 = sphi 0, %s40
      %s25 = sphi 0, %s36
      %s26 = sphi 0, %s22
      %s27 = sphi 0, %s23
      %s28 = sphi 0, %s24
      %s29 = sphi 0, %s25
      %s30 = sphi 0, %s26
      %s31 = sphi 0, %s27
      %s32 = sphi 0, %s28
      %s33 = sphi 0, %s29
      %s53 = sphi 0, %s55
      %s56 = sphi 0, %s53
      %s57 = sphi 0, %s56
      %s73 = sphi 0, %s57
      %s83 = sphi 0, %s85
      %s86 = sphi 0, %s83
      %s87 = sphi 0, %s86
      %s103 = sphi 0, %s87
      %s113 = sphi 0, %s115
      %s116 = sphi 0, %s113
      %s117 = sphi 0, %s116
      %s133 = sphi 0, %s117
    $region4: #{tpu_custom_call.1} parent=1 // loop_header_branch
      %18 = sbr.rel (%p16) target = $region8
    $region5: #{tpu_custom_call.1} parent=1 // loop_body
      %s20 = ssub.s32 %s15, 1
      %s21 = ssub.s32 %s15, 2
      %s34 = sadd.s32 1, %s25
      %p35 = scmp.ge.s32.totalorder %s34, 1
      %s36 = scalar_select %p35, 0, %s34
      %s37 = sadd.s32 1, %s24
      %s38 = scalar_select %p35, %s37, %s24
      %p39 = scmp.ge.s32.totalorder %s38, 1
      %s40 = scalar_select %p39, 0, %s38
      %s41 = sadd.s32 1, %s23
      %s42 = scalar_select %p39, %s41, %s23
      %p43 = scmp.ge.s32.totalorder %s42, 1
      %s44 = scalar_select %p43, 0, %s42
      %s45 = sadd.s32 1, %s22
      %s46 = scalar_select %p43, %s45, %s22
      %p47 = scmp.ge.s32.totalorder %s46, 2
      %s48 = scalar_select %p47, 0, %s46
      %s49 = ssub.s32 %s23, %s44
      %s50 = ssub.s32 %s25, %s36
      %s51 = sor.u32 %s49, %s50
      %p52 = scmp.eq.s32.totalorder %s51, 0
      %s54 = sadd.s32 %s53, 1
      %s55 = scalar_select %p52, %s53, %s54
      %p58 = pneg %p52
      %p59 = scmp.eq.s32.totalorder %s15, 1
      %p60 = por %p58, %p59
      %p61 = scmp.ne.s32.totalorder %s53, %s56
      %p62 = scmp.eq.s32.totalorder %s15, 0
      %p63 = por %p61, %p62
      %p64 = scmp.ne.s32.totalorder %s53, %s56
      %p65 = scmp.eq.s32.totalorder %s20, 1
      %p66 = por %p64, %p65
      %p67 = scmp.ne.s32.totalorder %s56, %s57
      %p68 = scmp.eq.s32.totalorder %s20, 0
      %p69 = por %p67, %p68
      %p70 = scmp.ne.s32.totalorder %s56, %s57
      %p71 = scmp.eq.s32.totalorder %s21, 1
      %p72 = por %p70, %p71
      %p74 = scmp.ne.s32.totalorder %s57, %s73
      %p75 = scmp.eq.s32.totalorder %s21, 0
      %p76 = por %p74, %p75
      %s77 = ssub.s32 %s22, %s48
      %s78 = ssub.s32 %s25, %s36
      %s79 = sor.u32 %s77, %s78
      %s80 = ssub.s32 %s24, %s40
      %s81 = sor.u32 %s79, %s80
      %p82 = scmp.eq.s32.totalorder %s81, 0
      %s84 = sadd.s32 %s83, 1
      %s85 = scalar_select %p82, %s83, %s84
      %p88 = pneg %p82
      %p89 = scmp.eq.s32.totalorder %s15, 1
      %p90 = por %p88, %p89
      %p91 = scmp.ne.s32.totalorder %s83, %s86
      %p92 = scmp.eq.s32.totalorder %s15, 0
      %p93 = por %p91, %p92
      %p94 = scmp.ne.s32.totalorder %s83, %s86
      %p95 = scmp.eq.s32.totalorder %s20, 1
      %p96 = por %p94, %p95
      %p97 = scmp.ne.s32.totalorder %s86, %s87
      %p98 = scmp.eq.s32.totalorder %s20, 0
      %p99 = por %p97, %p98
      %p100 = scmp.ne.s32.totalorder %s86, %s87
      %p101 = scmp.eq.s32.totalorder %s21, 1
      %p102 = por %p100, %p101
      %p104 = scmp.ne.s32.totalorder %s87, %s103
      %p105 = scmp.eq.s32.totalorder %s21, 0
      %p106 = por %p104, %p105
      %s107 = ssub.s32 %s22, %s48
      %s108 = ssub.s32 %s23, %s44
      %s109 = sor.u32 %s107, %s108
      %s110 = ssub.s32 %s24, %s40
      %s111 = sor.u32 %s109, %s110
      %p112 = scmp.eq.s32.totalorder %s111, 0
      %s114 = sadd.s32 %s113, 1
      %s115 = scalar_select %p112, %s113, %s114
      %p118 = pneg %p112
      %p119 = scmp.eq.s32.totalorder %s15, 1
      %p120 = por %p118, %p119
      %p121 = scmp.ne.s32.totalorder %s113, %s116
      %p122 = scmp.eq.s32.totalorder %s15, 0
      %p123 = por %p121, %p122
      %p124 = scmp.ne.s32.totalorder %s113, %s116
      %p125 = scmp.eq.s32.totalorder %s20, 1
      %p126 = por %p124, %p125
      %p127 = scmp.ne.s32.totalorder %s116, %s117
      %p128 = scmp.eq.s32.totalorder %s20, 0
      %p129 = por %p127, %p128
      %p130 = scmp.ne.s32.totalorder %s116, %s117
      %p131 = scmp.eq.s32.totalorder %s21, 1
      %p132 = por %p130, %p131
      %p134 = scmp.ne.s32.totalorder %s117, %s133
      %p135 = scmp.eq.s32.totalorder %s21, 0
      %p136 = por %p134, %p135
      %p137 = scmp.le.s32.totalorder 1, %s15
      %p138 = scmp.lt.s32.totalorder %s15, 3
      %p139 = pnand %p137, %p138
      %p140 = pneg %p139
      // Predicated region
      $region9: #{tpu_custom_call.1} parent=5 // pred_check
        _
      $region10: #{tpu_custom_call.1} parent=5 // pred_check_branch
        %142 = sbr.rel (%p139) target = $region12
      $region11: #{tpu_custom_call.1} parent=5 // pred_region
        %s143 = ssub.s32 %s15, 1
        // Predicated region
        $region13: #{tpu_custom_call.1} parent=11 // pred_check
          %p144 = pneg %p69
        $region14: #{tpu_custom_call.1} parent=11 // pred_check_branch
          %146 = sbr.rel (%p144) target = $region16
        $region15: #{tpu_custom_call.1} parent=11 // pred_region
          %s148 = ssub.s32 128, 128
          %149 = vsyncadd [#allocation4], %s148
          %s150 = sadd.s32 %s29, %s27
          %s151 = smul.addr %s150, 128
          %s152 = scalar_lea.hbm %s0, %s151
          %s154 = sshll.u32 [#allocation3], 4
          %s155 = int_to_ptr.vmem [resolvable:$true] %s154
          %157 = dma.hbm_to_vmem [thread:$0]  %s152, 128, %s155, [#allocation4]
        $region16: #{tpu_custom_call.1} parent=11 // pred_fallthru
          _
      $region12: #{tpu_custom_call.1} parent=5 // pred_fallthru
        _
      %p158 = scmp.lt.s32.totalorder %s15, 2
      // Predicated region
      $region17: #{tpu_custom_call.1} parent=5 // pred_check
        %p159 = pneg %p158
      $region18: #{tpu_custom_call.1} parent=5 // pred_check_branch
        %161 = sbr.rel (%p159) target = $region20
      $region19: #{tpu_custom_call.1} parent=5 // pred_region
        // Predicated region
        $region21: #{tpu_custom_call.1} parent=19 // pred_check
          %p162 = pneg %p93
        $region22: #{tpu_custom_call.1} parent=19 // pred_check_branch
          %164 = sbr.rel (%p162) target = $region24
        $region23: #{tpu_custom_call.1} parent=19 // pred_region
          %s165 = sand.u32 %s83, 1
          %s166 = scalar_lea.sflag [#allocation7], %s165
          %s167 = sand.u32 %s83, 1
          %s168 = smul.addr %s167, 128
          %s169 = scalar_lea.vmem [#allocation6], %s168
          %s170 = smul.u32 16, %s25
          %s172 = ssub.s32 2048, 2048
          %173 = vsyncadd %s166, %s172
          %s174 = sadd.s32 %s24, %s170
          %s175 = smul.addr %s22, 16
          %s176 = sadd.s32 %s174, %s175
          %s177 = smul.addr %s176, 128
          %s178 = scalar_lea.hbm %s1, %s177
          %s179 = sshll.u32 %s169, 4
          %s180 = int_to_ptr.vmem [resolvable:$true] %s179
          %185 = dma.hbm_to_vmem [thread:$0]  %s178, 2048, %s180, %s166, 128, 128, 8
        $region24: #{tpu_custom_call.1} parent=19 // pred_fallthru
          _
      $region20: #{tpu_custom_call.1} parent=5 // pred_fallthru
        _
      %p186 = scmp.le.s32.totalorder 1, %s15
      %p187 = scmp.lt.s32.totalorder %s15, 3
      %p188 = pnand %p186, %p187
      %p189 = pneg %p188
      // Predicated region
      $region25: #{tpu_custom_call.1} parent=5 // pred_check
        _
      $region26: #{tpu_custom_call.1} parent=5 // pred_check_branch
        %191 = sbr.rel (%p188) target = $region28
      $region27: #{tpu_custom_call.1} parent=5 // pred_region
        %s192 = ssub.s32 %s15, 1
        // Predicated region
        $region29: #{tpu_custom_call.1} parent=27 // pred_check
          %p193 = pneg %p69
        $region30: #{tpu_custom_call.1} parent=27 // pred_check_branch
          %195 = sbr.rel (%p193) target = $region32
        $region31: #{tpu_custom_call.1} parent=27 // pred_region
          %196 = dma.done [#allocation4], 128
        $region32: #{tpu_custom_call.1} parent=27 // pred_fallthru
          _
        %s197 = sand.u32 %s86, 1
        %s198 = scalar_lea.sflag [#allocation7], %s197
        %s199 = sand.u32 %s86, 1
        %s200 = smul.addr %s199, 128
        %s201 = scalar_lea.vmem [#allocation6], %s200
        // Predicated region
        $region33: #{tpu_custom_call.1} parent=27 // pred_check
          %p202 = pneg %p99
        $region34: #{tpu_custom_call.1} parent=27 // pred_check_branch
          %204 = sbr.rel (%p202) target = $region36
        $region35: #{tpu_custom_call.1} parent=27 // pred_region
          %205 = dma.done %s198, 2048
        $region36: #{tpu_custom_call.1} parent=27 // pred_fallthru
          _
        %p206 = pneg %p69
        %p207 = pneg %p66
        %s208 = sand.u32 %s86, 1
        %s209 = scalar_lea.sflag [#allocation7], %s208
        %s210 = sand.u32 %s86, 1
        %s211 = smul.addr %s210, 128
        %s212 = scalar_lea.vmem [#allocation6], %s211
        %p213 = pneg %p99
        %p214 = pneg %p96
        %p215 = pneg %p129
        %p216 = pneg %p126
        %s217 = sand.u32 %s116, 1
        %s218 = scalar_lea.sflag [#allocation5], %s217
        %s219 = sand.u32 %s116, 1
        %s220 = smul.addr %s219, 8
        %s221 = scalar_lea.vmem [#allocation8], %s220
        %s222 = smul.u32 16, %s29
        %p223 = scmp.eq.s32.totalorder %s29, 0
        // Predicated region
        $region37: #{tpu_custom_call.1} parent=27 // pred_check
          %p224 = pneg %p223
        $region38: #{tpu_custom_call.1} parent=27 // pred_check_branch
          %226 = sbr.rel (%p224) target = $region40
        $region39: #{tpu_custom_call.1} parent=27 // pred_region
          %227 = vst [vmem:[#allocation2] sm:$0xff] 0.0
        $region40: #{tpu_custom_call.1} parent=27 // pred_fallthru
          _
        %v228 = vld [vmem:[#allocation2] sm:$0xff]
        %v229 = vld [vmem:[#allocation3] sm:$0xff]
        %v230 = vld [vmem:[%s201] sm:$0xff]
        %v231 = vld [vmem:[%s201 + $0x8] sm:$0xff]
        %v232 = vld [vmem:[%s201 + $0x10] sm:$0xff]
        %v233 = vld [vmem:[%s201 + $0x18] sm:$0xff]
        %v234 = vld [vmem:[%s201 + $0x20] sm:$0xff]
        %v235 = vld [vmem:[%s201 + $0x28] sm:$0xff]
        %v236 = vld [vmem:[%s201 + $0x30] sm:$0xff]
        %v237 = vld [vmem:[%s201 + $0x38] sm:$0xff]
        %v238 = vld [vmem:[%s201 + $0x40] sm:$0xff]
        %v239 = vld [vmem:[%s201 + $0x48] sm:$0xff]
        %v240 = vld [vmem:[%s201 + $0x50] sm:$0xff]
        %v241 = vld [vmem:[%s201 + $0x58] sm:$0xff]
        %v242 = vld [vmem:[%s201 + $0x60] sm:$0xff]
        %v243 = vld [vmem:[%s201 + $0x68] sm:$0xff]
        %v244 = vld [vmem:[%s201 + $0x70] sm:$0xff]
        %v245 = vld [vmem:[%s201 + $0x78] sm:$0xff]
        %246 = vmatprep.subr.mxu0 0.0
        %247 = vmatpush1.msra.mxu0 %v245
        %248 = vmatprep.subr.mxu0 0.0
        %249 = vmatpush1.msra.mxu0 %v244
        %250 = vmatprep.subr.mxu0 0.0
        %251 = vmatpush1.msra.mxu0 %v243
        %252 = vmatprep.subr.mxu0 0.0
        %253 = vmatpush1.msra.mxu0 %v242
        %254 = vmatprep.subr.mxu0 0.0
        %255 = vmatpush1.msra.mxu0 %v241
        %256 = vmatprep.subr.mxu0 0.0
        %257 = vmatpush1.msra.mxu0 %v240
        %258 = vmatprep.subr.mxu0 0.0
        %259 = vmatpush1.msra.mxu0 %v239
        %260 = vmatprep.subr.mxu0 0.0
        %261 = vmatpush1.msra.mxu0 %v238
        %262 = vmatprep.subr.mxu0 0.0
        %263 = vmatpush1.msra.mxu0 %v237
        %264 = vmatprep.subr.mxu0 0.0
        %265 = vmatpush1.msra.mxu0 %v236
        %266 = vmatprep.subr.mxu0 0.0
        %267 = vmatpush1.msra.mxu0 %v235
        %268 = vmatprep.subr.mxu0 0.0
        %269 = vmatpush1.msra.mxu0 %v234
        %270 = vmatprep.subr.mxu0 0.0
        %271 = vmatpush1.msra.mxu0 %v233
        %272 = vmatprep.subr.mxu0 0.0
        %273 = vmatpush1.msra.mxu0 %v232
        %274 = vmatprep.subr.mxu0 0.0
        %275 = vmatpush1.msra.mxu0 %v231
        %276 = vmatprep.subr.mxu0 0.0
        %277 = vmatpush1.msra.mxu0 %v230
        %278 = vmatprep.subr.mxu0 0.0
        %279 = vmatpush2.msra.mxu0 0.0
        %280 = vmatprep.subr.mxu0 0.0
        %281 = vmatpush2.msra.mxu0 0.0
        %282 = vmatprep.subr.mxu0 0.0
        %283 = vmatpush2.msra.mxu0 0.0
        %284 = vmatprep.subr.mxu0 0.0
        %285 = vmatpush2.msra.mxu0 0.0
        %286 = vmatprep.subr.mxu0 0.0
        %287 = vmatpush2.msra.mxu0 0.0
        %288 = vmatprep.subr.mxu0 0.0
        %289 = vmatpush2.msra.mxu0 0.0
        %290 = vmatprep.subr.mxu0 0.0
        %291 = vmatpush2.msra.mxu0 0.0
        %292 = vmatprep.subr.mxu0 0.0
        %293 = vmatpush2.msra.mxu0 0.0
        %294 = vmatprep.subr.mxu0 0.0
        %295 = vmatpush2.msra.mxu0 0.0
        %296 = vmatprep.subr.mxu0 0.0
        %297 = vmatpush2.msra.mxu0 0.0
        %298 = vmatprep.subr.mxu0 0.0
        %299 = vmatpush2.msra.mxu0 0.0
        %300 = vmatprep.subr.mxu0 0.0
        %301 = vmatpush2.msra.mxu0 0.0
        %302 = vmatprep.subr.mxu0 0.0
        %303 = vmatpush2.msra.mxu0 0.0
        %304 = vmatprep.subr.mxu0 0.0
        %305 = vmatpush2.msra.mxu0 0.0
        %306 = vmatprep.subr.mxu0 0.0
        %307 = vmatpush2.msra.mxu0 0.0
        %308 = vmatprep.subr.mxu0 0.0
        %309 = vmatpush2.msra.mxu0 0.0
        %310 = vmatprep.mubr.f32.mxu0 0.0
        %311 = vmatmul.mubr.f32.gmra.mxu0 %v229
        %v312 = vpop.f32.mrf.mxu0
        %v313 = vadd.f32 0.0, %v312
        %v314 = vpop.f32.mrf.mxu0
        %315 = vdwg.mxu0
        %v316 = vadd.f32 %v228, %v313
        %317 = vst [vmem:[#allocation2] sm:$0xff] %v316
        // Predicated region
        $region41: #{tpu_custom_call.1} parent=27 // pred_check
          %p318 = pneg %p223
        $region42: #{tpu_custom_call.1} parent=27 // pred_check_branch
          %320 = sbr.rel (%p318) target = $region44
        $region43: #{tpu_custom_call.1} parent=27 // pred_region
          %v321 = vld [vmem:[#allocation2] sm:$0xff]
          %322 = vst [vmem:[%s221] sm:$0xff] %v321
        $region44: #{tpu_custom_call.1} parent=27 // pred_fallthru
          _
        %s323 = sand.u32 %s116, 1
        %s324 = scalar_lea.sflag [#allocation5], %s323
        %s325 = sand.u32 %s116, 1
        %s326 = smul.addr %s325, 8
        %s327 = scalar_lea.vmem [#allocation8], %s326
        // Predicated region
        $region45: #{tpu_custom_call.1} parent=27 // pred_check
          %p328 = pneg %p126
        $region46: #{tpu_custom_call.1} parent=27 // pred_check_branch
          %330 = sbr.rel (%p328) target = $region48
        $region47: #{tpu_custom_call.1} parent=27 // pred_region
          %s332 = ssub.s32 128, 128
          %333 = vsyncadd %s324, %s332
          %s334 = sadd.s32 %s28, %s27
          %s335 = sadd.s32 %s334, %s26
          %s336 = smul.addr %s335, 128
          %s337 = scalar_lea.hbm %s2, %s336
          %s339 = sshll.u32 %s327, 4
          %s340 = int_to_ptr.vmem [resolvable:$true] %s339
          %342 = dma.vmem_to_hbm [thread:$0]  %s340, 128, %s337, %s324
        $region48: #{tpu_custom_call.1} parent=27 // pred_fallthru
          _
      $region28: #{tpu_custom_call.1} parent=5 // pred_fallthru
        _
      %p343 = scmp.le.s32.totalorder 2, %s15
      // Predicated region
      $region49: #{tpu_custom_call.1} parent=5 // pred_check
        %p344 = pneg %p343
      $region50: #{tpu_custom_call.1} parent=5 // pred_check_branch
        %346 = sbr.rel (%p344) target = $region52
      $region51: #{tpu_custom_call.1} parent=5 // pred_region
        %s347 = ssub.s32 %s15, 2
        // Predicated region
        $region53: #{tpu_custom_call.1} parent=51 // pred_check
          %p348 = pneg %p132
        $region54: #{tpu_custom_call.1} parent=51 // pred_check_branch
          %350 = sbr.rel (%p348) target = $region56
        $region55: #{tpu_custom_call.1} parent=51 // pred_region
          %s351 = sand.u32 %s117, 1
          %s352 = scalar_lea.sflag [#allocation5], %s351
          %s353 = sand.u32 %s117, 1
          %s354 = smul.addr %s353, 8
          %s355 = scalar_lea.vmem [#allocation8], %s354
          %356 = dma.done %s352, 128
        $region56: #{tpu_custom_call.1} parent=51 // pred_fallthru
          _
      $region52: #{tpu_custom_call.1} parent=5 // pred_fallthru
        _
    $region6: #{tpu_custom_call.1} parent=1 // loop_footer
      %s19 = sadd.s32 1, %s15
    $region7: #{tpu_custom_call.1} parent=1 // loop_footer_branch
      %14 = sbr.rel target = $region3
    $region8: #{tpu_custom_call.1} parent=1 // loop_exit
      _
    %357 = vsyncpa [#allocation4], 1
    %s358 = scalar_lea.sflag [#allocation4], 1
    %359 = vsyncpa %s358, 1
    %360 = vsyncpa [#allocation7], 1
    %s361 = scalar_lea.sflag [#allocation7], 1
    %362 = vsyncpa %s361, 1
    %363 = vsyncpa [#allocation5], 1
    %s364 = scalar_lea.sflag [#allocation5], 1
    %365 = vsyncpa %s364, 1

</llo_original>
